<compile_context>
chip_gen: v6e
topology: v6e:2x2x1
jax: 0.10.0
libtpu: 0.0.40
codegen_flags: <defaults>
</compile_context>

<pallas_src>
import functools

import jax
import jax.numpy as jnp
from jax.experimental import pallas as pl
from jax.experimental.pallas import tpu as pltpu

K_SHARPNESS = 50.0
EPS = 1e-6
LANE = 512          # lane-dense last dim (multiple of 128)
BLOCK_ROWS = 512    # default rows per block -> (512, 512) f32 = 1 MiB per input


def _round_up(x, m):
    return (x + m - 1) // m * m


def _sigmoid(x):
    # 0.5*tanh(0.5*x) + 0.5 == 1/(1+exp(-x)); a single EUP op per element.
    return 0.5 * jnp.tanh(0.5 * x) + 0.5


def _dice_partial_kernel(b_ref, t_ref, tgt_ref, mask_ref, out_ref, *, k):
    """One grid step: fold a (R, LANE) block of the four streams onto three
    (8, LANE) per-lane partial accumulators and write them to this step's
    output slot.  No cross-lane reductions, no carried state."""
    b = _sigmoid(b_ref[...].astype(jnp.float32))
    t = _sigmoid(t_ref[...].astype(jnp.float32))
    # output = 1 / (1 + exp(-k * (b - t)))
    output = _sigmoid(k * (b - t))

    tgt = tgt_ref[...].astype(jnp.float32)
    m = mask_ref[...].astype(jnp.float32)

    om = output * m
    tm = tgt * m

    rows, lane = om.shape

    def fold(x):
        # (R, LANE) -> (R//8, 8, LANE); summing the leading axis is a pure
        # vreg-to-vreg VPU add (same sublane/lane positions), no XLU traffic.
        return x.reshape(rows // 8, 8, lane).sum(axis=0)

    out_ref[0, 0, :, :] = fold(om * tgt)   # intersection partial
    out_ref[0, 1, :, :] = fold(om)         # sum(output * mask) partial
    out_ref[0, 2, :, :] = fold(tm)         # sum(target * mask) partial


def _flatten_pad(x, padded_total, dtype):
    flat = x.reshape(-1)
    if dtype is not None:
        flat = flat.astype(dtype)
    pad = padded_total - flat.shape[0]
    if pad:
        flat = jnp.pad(flat, (0, pad))
    return flat.reshape(padded_total // LANE, LANE)


def dice_loss(b, t, target, mask, *, k=K_SHARPNESS, eps=EPS,
              block_rows=BLOCK_ROWS, input_dtype=None):
    """b, t, target: (N, 1, H, W); mask: (N, H, W). Returns scalar f32 loss.

    input_dtype: optionally cast the streamed inputs (e.g. jnp.bfloat16) to
    halve HBM traffic; compute is always f32 inside the kernel.
    """
    assert b.ndim == 4 and b.shape[1] == 1
    n, _, h, w = b.shape
    assert target.shape == b.shape and t.shape == b.shape
    assert mask.shape == (n, h, w)

    total = n * h * w

    # Lane-dense slab: rows x LANE, rows a multiple of block_rows (itself a
    # multiple of 8).  Zero padding is exactly neutral since every sum is
    # multiplied by mask and the padded mask is 0.
    rows_needed = pl.cdiv(total, LANE)
    block_rows = min(block_rows, _round_up(rows_needed, 8))
    rows = _round_up(rows_needed, block_rows)
    padded_total = rows * LANE
    grid = (rows // block_rows,)

    b2 = _flatten_pad(b[:, 0, :, :], padded_total, input_dtype)
    t2 = _flatten_pad(t[:, 0, :, :], padded_total, input_dtype)
    tgt2 = _flatten_pad(target[:, 0, :, :], padded_total, input_dtype)
    m2 = _flatten_pad(mask, padded_total, input_dtype)

    in_spec = pl.BlockSpec((block_rows, LANE), lambda i: (i, 0))

    partials = pl.pallas_call(
        functools.partial(_dice_partial_kernel, k=k),
        out_shape=jax.ShapeDtypeStruct((grid[0], 3, 8, LANE), jnp.float32),
        grid_spec=pltpu.PrefetchScalarGridSpec(
            num_scalar_prefetch=0,
            grid=grid,
            in_specs=[in_spec, in_spec, in_spec, in_spec],
            out_specs=pl.BlockSpec((1, 3, 8, LANE), lambda i: (i, 0, 0, 0)),
        ),
        compiler_params=pltpu.CompilerParams(
            # Steps are independent (each owns its output slot); on v7x the two
            # TensorCores split this axis.
            dimension_semantics=("parallel",),
            vmem_limit_bytes=32 * 1024 * 1024,
        ),
    )(b2, t2, tgt2, m2)

    # Tiny cross-lane reduction (48 KiB per grid step) + final scalar math in XLA.
    sums = jnp.sum(partials, axis=(0, 2, 3))       # (3,)
    intersection = sums[0]
    union = sums[1] + sums[2] + eps
    return 1.0 - 2.0 * intersection / union


def _dice_loss_ref(b, t, target, mask, *, k=K_SHARPNESS, eps=EPS):
    b = jax.nn.sigmoid(b)
    t = jax.nn.sigmoid(t)
    output = 1.0 / (1.0 + jnp.exp(-k * (b - t)))
    output = output[:, 0, :, :]
    target = target[:, 0, :, :]
    intersection = jnp.sum(output * target * mask)
    union = jnp.sum(output * mask) + jnp.sum(target * mask) + eps
    return 1.0 - 2.0 * intersection / union


if __name__ == "__main__":
    key = jax.random.PRNGKey(0)
    kb, kt, ktar, kmask = jax.random.split(key, 4)

    N, C, H, W = 2, 1, 16, 16
    b = jax.random.normal(kb, (N, C, H, W), dtype=jnp.float32)
    t = jax.random.normal(kt, (N, C, H, W), dtype=jnp.float32)
    # target is a heatmap in [0, 1]; mask is binary
    target = jax.random.uniform(ktar, (N, C, H, W), dtype=jnp.float32)
    mask = (jax.random.uniform(kmask, (N, H, W)) > 0.3).astype(jnp.float32)

    loss = jax.block_until_ready(dice_loss(b, t, target, mask))

    ref = _dice_loss_ref(b, t, target, mask)
    assert jnp.allclose(loss, ref, atol=1e-4, rtol=1e-4), (loss, ref)
    assert float(loss) <= 1.0 + 1e-6

    print("KERNEL_OK")
</pallas_src>

<mosaic_0001>
module attributes {stable_mosaic.version = 11 : i64} {
  func.func @_dice_partial_kernel(%arg0: i32, %arg1: memref<8x512xf32, #tpu.memory_space<vmem>>, %arg2: memref<8x512xf32, #tpu.memory_space<vmem>>, %arg3: memref<8x512xf32, #tpu.memory_space<vmem>>, %arg4: memref<8x512xf32, #tpu.memory_space<vmem>>, %arg5: memref<1x3x8x512xf32, #tpu.memory_space<vmem>>) attributes {dimension_semantics = [#tpu.dimension_semantics<parallel>], iteration_bounds = array<i64: 1>, scalar_prefetch = 0 : i64, scratch_operands = 0 : i64, tpu.core_type = #tpu.core_type<tc>, window_params = [{transform_indices = @transform_0, window_bounds = array<i64: 8, 512>}, {transform_indices = @transform_1, window_bounds = array<i64: 8, 512>}, {transform_indices = @transform_2, window_bounds = array<i64: 8, 512>}, {transform_indices = @transform_3, window_bounds = array<i64: 8, 512>}, {transform_indices = @transform_4, window_bounds = array<i64: 1, 3, 8, 512>}]} {
    %c0 = arith.constant 0 : index
    %c0_0 = arith.constant 0 : index
    %0 = vector.load %arg1[%c0, %c0_0] : memref<8x512xf32, #tpu.memory_space<vmem>>, vector<8x512xf32>
    %cst = arith.constant 5.000000e-01 : f32
    %1 = vector.broadcast %cst : f32 to vector<8x512xf32>
    %2 = arith.mulf %1, %0 : vector<8x512xf32>
    %3 = math.tanh %2 : vector<8x512xf32>
    %cst_1 = arith.constant 5.000000e-01 : f32
    %4 = vector.broadcast %cst_1 : f32 to vector<8x512xf32>
    %5 = arith.mulf %4, %3 : vector<8x512xf32>
    %cst_2 = arith.constant 5.000000e-01 : f32
    %6 = vector.broadcast %cst_2 : f32 to vector<8x512xf32>
    %7 = arith.addf %5, %6 : vector<8x512xf32>
    %c0_3 = arith.constant 0 : index
    %c0_4 = arith.constant 0 : index
    %8 = vector.load %arg2[%c0_3, %c0_4] : memref<8x512xf32, #tpu.memory_space<vmem>>, vector<8x512xf32>
    %cst_5 = arith.constant 5.000000e-01 : f32
    %9 = vector.broadcast %cst_5 : f32 to vector<8x512xf32>
    %10 = arith.mulf %9, %8 : vector<8x512xf32>
    %11 = math.tanh %10 : vector<8x512xf32>
    %cst_6 = arith.constant 5.000000e-01 : f32
    %12 = vector.broadcast %cst_6 : f32 to vector<8x512xf32>
    %13 = arith.mulf %12, %11 : vector<8x512xf32>
    %cst_7 = arith.constant 5.000000e-01 : f32
    %14 = vector.broadcast %cst_7 : f32 to vector<8x512xf32>
    %15 = arith.addf %13, %14 : vector<8x512xf32>
    %16 = arith.subf %7, %15 : vector<8x512xf32>
    %cst_8 = arith.constant 5.000000e+01 : f32
    %17 = vector.broadcast %cst_8 : f32 to vector<8x512xf32>
    %18 = arith.mulf %17, %16 : vector<8x512xf32>
    %cst_9 = arith.constant 5.000000e-01 : f32
    %19 = vector.broadcast %cst_9 : f32 to vector<8x512xf32>
    %20 = arith.mulf %19, %18 : vector<8x512xf32>
    %21 = math.tanh %20 : vector<8x512xf32>
    %cst_10 = arith.constant 5.000000e-01 : f32
    %22 = vector.broadcast %cst_10 : f32 to vector<8x512xf32>
    %23 = arith.mulf %22, %21 : vector<8x512xf32>
    %cst_11 = arith.constant 5.000000e-01 : f32
    %24 = vector.broadcast %cst_11 : f32 to vector<8x512xf32>
    %25 = arith.addf %23, %24 : vector<8x512xf32>
    %c0_12 = arith.constant 0 : index
    %c0_13 = arith.constant 0 : index
    %26 = vector.load %arg3[%c0_12, %c0_13] : memref<8x512xf32, #tpu.memory_space<vmem>>, vector<8x512xf32>
    %c0_14 = arith.constant 0 : index
    %c0_15 = arith.constant 0 : index
    %27 = vector.load %arg4[%c0_14, %c0_15] : memref<8x512xf32, #tpu.memory_space<vmem>>, vector<8x512xf32>
    %28 = arith.mulf %25, %27 : vector<8x512xf32>
    %29 = arith.mulf %26, %27 : vector<8x512xf32>
    %30 = arith.mulf %28, %26 : vector<8x512xf32>
    %31 = vector.shape_cast %30 : vector<8x512xf32> to vector<1x8x512xf32>
    %cst_16 = arith.constant dense<0.000000e+00> : vector<8x512xf32>
    %32 = vector.multi_reduction <add>, %31, %cst_16 [0] : vector<1x8x512xf32> to vector<8x512xf32>
    %c0_17 = arith.constant 0 : index
    %c0_18 = arith.constant 0 : index
    %c0_19 = arith.constant 0 : index
    %c0_20 = arith.constant 0 : index
    %33 = vector.load %arg5[%c0_17, %c0_18, %c0_19, %c0_20] : memref<1x3x8x512xf32, #tpu.memory_space<vmem>>, vector<1x1x8x512xf32>
    %34 = vector.shape_cast %33 : vector<1x1x8x512xf32> to vector<8x512xf32>
    %35 = vector.shape_cast %32 : vector<8x512xf32> to vector<1x1x8x512xf32>
    tpu.vector_store %arg5[%c0_17, %c0_18, %c0_19, %c0_20], %35 {strides = array<i32>} : memref<1x3x8x512xf32, #tpu.memory_space<vmem>>, vector<1x1x8x512xf32>,
    %36 = vector.shape_cast %28 : vector<8x512xf32> to vector<1x8x512xf32>
    %cst_21 = arith.constant dense<0.000000e+00> : vector<8x512xf32>
    %37 = vector.multi_reduction <add>, %36, %cst_21 [0] : vector<1x8x512xf32> to vector<8x512xf32>
    %c0_22 = arith.constant 0 : index
    %c1 = arith.constant 1 : index
    %c0_23 = arith.constant 0 : index
    %c0_24 = arith.constant 0 : index
    %38 = vector.load %arg5[%c0_22, %c1, %c0_23, %c0_24] : memref<1x3x8x512xf32, #tpu.memory_space<vmem>>, vector<1x1x8x512xf32>
    %39 = vector.shape_cast %38 : vector<1x1x8x512xf32> to vector<8x512xf32>
    %40 = vector.shape_cast %37 : vector<8x512xf32> to vector<1x1x8x512xf32>
    tpu.vector_store %arg5[%c0_22, %c1, %c0_23, %c0_24], %40 {strides = array<i32>} : memref<1x3x8x512xf32, #tpu.memory_space<vmem>>, vector<1x1x8x512xf32>,
    %41 = vector.shape_cast %29 : vector<8x512xf32> to vector<1x8x512xf32>
    %cst_25 = arith.constant dense<0.000000e+00> : vector<8x512xf32>
    %42 = vector.multi_reduction <add>, %41, %cst_25 [0] : vector<1x8x512xf32> to vector<8x512xf32>
    %c0_26 = arith.constant 0 : index
    %c2 = arith.constant 2 : index
    %c0_27 = arith.constant 0 : index
    %c0_28 = arith.constant 0 : index
    %43 = vector.load %arg5[%c0_26, %c2, %c0_27, %c0_28] : memref<1x3x8x512xf32, #tpu.memory_space<vmem>>, vector<1x1x8x512xf32>
    %44 = vector.shape_cast %43 : vector<1x1x8x512xf32> to vector<8x512xf32>
    %45 = vector.shape_cast %42 : vector<8x512xf32> to vector<1x1x8x512xf32>
    tpu.vector_store %arg5[%c0_26, %c2, %c0_27, %c0_28], %45 {strides = array<i32>} : memref<1x3x8x512xf32, #tpu.memory_space<vmem>>, vector<1x1x8x512xf32>,
    return
  }
  func.func @transform_0(%arg0: i32) -> (i32, i32) {
    %c0_i32 = arith.constant 0 : i32
    %c0_i32_0 = arith.constant 0 : i32
    return %arg0, %c0_i32 : i32, i32
  }
  func.func @transform_1(%arg0: i32) -> (i32, i32) {
    %c0_i32 = arith.constant 0 : i32
    %c0_i32_0 = arith.constant 0 : i32
    return %arg0, %c0_i32 : i32, i32
  }
  func.func @transform_2(%arg0: i32) -> (i32, i32) {
    %c0_i32 = arith.constant 0 : i32
    %c0_i32_0 = arith.constant 0 : i32
    return %arg0, %c0_i32 : i32, i32
  }
  func.func @transform_3(%arg0: i32) -> (i32, i32) {
    %c0_i32 = arith.constant 0 : i32
    %c0_i32_0 = arith.constant 0 : i32
    return %arg0, %c0_i32 : i32, i32
  }
  func.func @transform_4(%arg0: i32) -> (i32, i32, i32, i32) {
    %c0_i32 = arith.constant 0 : i32
    %c0_i32_0 = arith.constant 0 : i32
    %c0_i32_1 = arith.constant 0 : i32
    %c0_i32_2 = arith.constant 0 : i32
    return %arg0, %c0_i32, %c0_i32_0, %c0_i32_1 : i32, i32, i32, i32
  }
}

</mosaic_0001>

<llo_original>
// kernel: tpu_custom_call.1
$region0: #{tpu_custom_call.1}
  #allocation0 [shape = 'u32[]', space=smem, size = 0x4, offset = 0x4, fixed_abs, tag = 'smem constant byte address 0x4 - core index']
  #allocation1 [shape = 'u32[144,128]{1,0:T(1,128)}', space=vmem, size = 0x12000, scoped, tag = 'internal scratch']
  %s0 = inlined_call_operand.hbm [shape: f32[8,512], index: 0, kind: input, shape index: {}]
  %s1 = inlined_call_operand.hbm [shape: f32[8,512], index: 1, kind: input, shape index: {}]
  %s2 = inlined_call_operand.hbm [shape: f32[8,512], index: 2, kind: input, shape index: {}]
  %s3 = inlined_call_operand.hbm [shape: f32[8,512], index: 3, kind: input, shape index: {}]
  %s4 = inlined_call_operand.hbm [shape: f32[1,3,8,512], index: 4, kind: output, shape index: {}]
  %s5 = sld [smem:[#allocation0]]
  $region42: #{tpu_custom_call.1} parent=0
    _
  %s7 = ssub.s32 1, %s5
  %s8 = scalar_select 0, %s7, %s5
  $region1: #{tpu_custom_call.1} parent=0
    #allocation2 [shape = 'u8[16384]{0}', space=vmem, size = 0x4000, scoped, tag = 'input window, operand 0, single buffered']
    #allocation3 [shape = 's32[1]{0}', space=sflag, size = 0x4, scoped, tag = 'scoped memory for tpu_custom_call.1']
    #allocation4 [shape = 's32[1]{0}', space=sflag, size = 0x4, scoped, tag = 'scoped memory for tpu_custom_call.1']
    #allocation5 [shape = 'u8[16384]{0}', space=vmem, size = 0x4000, scoped, tag = 'input window, operand 1, single buffered']
    #allocation6 [shape = 's32[1]{0}', space=sflag, size = 0x4, scoped, tag = 'scoped memory for tpu_custom_call.1']
    #allocation7 [shape = 'u8[16384]{0}', space=vmem, size = 0x4000, scoped, tag = 'input window, operand 2, single buffered']
    #allocation8 [shape = 'u8[16384]{0}', space=vmem, size = 0x4000, scoped, tag = 'input window, operand 3, single buffered']
    #allocation9 [shape = 's32[1]{0}', space=sflag, size = 0x4, scoped, tag = 'scoped memory for tpu_custom_call.1']
    #allocation10 [shape = 'u8[49152]{0}', space=vmem, size = 0xc000, scoped, tag = 'output window, operand 0, single buffered']
    %9 = vsyncpa [#allocation3], 0
    %10 = vsyncpa [#allocation6], 0
    %11 = vsyncpa [#allocation9], 0
    %12 = vsyncpa [#allocation4], 0
    // Predicated region
    $region2: #{tpu_custom_call.1} parent=1 // pred_check
      _
    $region3: #{tpu_custom_call.1} parent=1 // pred_check_branch
      %14 = sbr.rel (0) target = $region5
    $region4: #{tpu_custom_call.1} parent=1 // pred_region
      %s16 = ssub.s32 512, 512
      %17 = vsyncadd [#allocation3], %s16
      %s19 = sshll.u32 [#allocation2], 4
      %s20 = int_to_ptr.vmem [resolvable:$true] %s19
      %22 = dma.hbm_to_vmem [thread:$0]  %s0, 512, %s20, [#allocation3]
    $region5: #{tpu_custom_call.1} parent=1 // pred_fallthru
      _
    // Predicated region
    $region6: #{tpu_custom_call.1} parent=1 // pred_check
      _
    $region7: #{tpu_custom_call.1} parent=1 // pred_check_branch
      %24 = sbr.rel (0) target = $region9
    $region8: #{tpu_custom_call.1} parent=1 // pred_region
      %s26 = ssub.s32 512, 512
      %27 = vsyncadd [#allocation6], %s26
      %s29 = sshll.u32 [#allocation5], 4
      %s30 = int_to_ptr.vmem [resolvable:$true] %s29
      %32 = dma.hbm_to_vmem [thread:$0]  %s1, 512, %s30, [#allocation6]
    $region9: #{tpu_custom_call.1} parent=1 // pred_fallthru
      _
    // Predicated region
    $region10: #{tpu_custom_call.1} parent=1 // pred_check
      _
    $region11: #{tpu_custom_call.1} parent=1 // pred_check_branch
      %34 = sbr.rel (0) target = $region13
    $region12: #{tpu_custom_call.1} parent=1 // pred_region
      %s36 = ssub.s32 512, 512
      %37 = vsyncadd [#allocation6], %s36
      %s39 = sshll.u32 [#allocation7], 4
      %s40 = int_to_ptr.vmem [resolvable:$true] %s39
      %42 = dma.hbm_to_vmem [thread:$0]  %s2, 512, %s40, [#allocation6]
    $region13: #{tpu_custom_call.1} parent=1 // pred_fallthru
      _
    // Predicated region
    $region14: #{tpu_custom_call.1} parent=1 // pred_check
      _
    $region15: #{tpu_custom_call.1} parent=1 // pred_check_branch
      %44 = sbr.rel (0) target = $region17
    $region16: #{tpu_custom_call.1} parent=1 // pred_region
      %s46 = ssub.s32 512, 512
      %47 = vsyncadd [#allocation9], %s46
      %s49 = sshll.u32 [#allocation8], 4
      %s50 = int_to_ptr.vmem [resolvable:$true] %s49
      %52 = dma.hbm_to_vmem [thread:$0]  %s3, 512, %s50, [#allocation9]
    $region17: #{tpu_custom_call.1} parent=1 // pred_fallthru
      _
    // Predicated region
    $region18: #{tpu_custom_call.1} parent=1 // pred_check
      _
    $region19: #{tpu_custom_call.1} parent=1 // pred_check_branch
      %54 = sbr.rel (0) target = $region21
    $region20: #{tpu_custom_call.1} parent=1 // pred_region
      %55 = dma.done [#allocation3], 512
    $region21: #{tpu_custom_call.1} parent=1 // pred_fallthru
      _
    // Predicated region
    $region22: #{tpu_custom_call.1} parent=1 // pred_check
      _
    $region23: #{tpu_custom_call.1} parent=1 // pred_check_branch
      %57 = sbr.rel (0) target = $region25
    $region24: #{tpu_custom_call.1} parent=1 // pred_region
      %58 = dma.done [#allocation6], 512
    $region25: #{tpu_custom_call.1} parent=1 // pred_fallthru
      _
    // Predicated region
    $region26: #{tpu_custom_call.1} parent=1 // pred_check
      _
    $region27: #{tpu_custom_call.1} parent=1 // pred_check_branch
      %60 = sbr.rel (0) target = $region29
    $region28: #{tpu_custom_call.1} parent=1 // pred_region
      %61 = dma.done [#allocation6], 512
    $region29: #{tpu_custom_call.1} parent=1 // pred_fallthru
      _
    // Predicated region
    $region30: #{tpu_custom_call.1} parent=1 // pred_check
      _
    $region31: #{tpu_custom_call.1} parent=1 // pred_check_branch
      %63 = sbr.rel (0) target = $region33
    $region32: #{tpu_custom_call.1} parent=1 // pred_region
      %64 = dma.done [#allocation9], 512
    $region33: #{tpu_custom_call.1} parent=1 // pred_fallthru
      _
    %v65 = vld [vmem:[#allocation2] sm:$0xff]
    %v66 = vld [vmem:[#allocation2 + $0x8] sm:$0xff]
    %v67 = vld [vmem:[#allocation2 + $0x10] sm:$0xff]
    %v68 = vld [vmem:[#allocation2 + $0x18] sm:$0xff]
    %v69 = vmul.f32 %v65, 0.5
    %v70 = vmul.f32 %v66, 0.5
    %v71 = vmul.f32 %v67, 0.5
    %v72 = vmul.f32 %v68, 0.5
    %v73 = vtanh.pop %v69
    %v74 = vtanh.pop %v70
    %v75 = vtanh.pop %v71
    %v76 = vtanh.pop %v72
    %v77 = vmul.f32 %v73, 0.5
    %v78 = vmul.f32 %v74, 0.5
    %v79 = vmul.f32 %v75, 0.5
    %v80 = vmul.f32 %v76, 0.5
    %v81 = vadd.f32 %v77, 0.5
    %v82 = vadd.f32 %v78, 0.5
    %v83 = vadd.f32 %v79, 0.5
    %v84 = vadd.f32 %v80, 0.5
    %v85 = vld [vmem:[#allocation5] sm:$0xff]
    %v86 = vld [vmem:[#allocation5 + $0x8] sm:$0xff]
    %v87 = vld [vmem:[#allocation5 + $0x10] sm:$0xff]
    %v88 = vld [vmem:[#allocation5 + $0x18] sm:$0xff]
    %v89 = vmul.f32 %v85, 0.5
    %v90 = vmul.f32 %v86, 0.5
    %v91 = vmul.f32 %v87, 0.5
    %v92 = vmul.f32 %v88, 0.5
    %v93 = vtanh.pop %v89
    %v94 = vtanh.pop %v90
    %v95 = vtanh.pop %v91
    %v96 = vtanh.pop %v92
    %v97 = vmul.f32 %v93, 0.5
    %v98 = vmul.f32 %v94, 0.5
    %v99 = vmul.f32 %v95, 0.5
    %v100 = vmul.f32 %v96, 0.5
    %v101 = vadd.f32 %v97, 0.5
    %v102 = vadd.f32 %v98, 0.5
    %v103 = vadd.f32 %v99, 0.5
    %v104 = vadd.f32 %v100, 0.5
    %v105 = vsub.f32 %v81, %v101
    %v106 = vsub.f32 %v82, %v102
    %v107 = vsub.f32 %v83, %v103
    %v108 = vsub.f32 %v84, %v104
    %v109 = vmul.f32 %v105, 50.0
    %v110 = vmul.f32 %v106, 50.0
    %v111 = vmul.f32 %v107, 50.0
    %v112 = vmul.f32 %v108, 50.0
    %v113 = vmul.f32 %v109, 0.5
    %v114 = vmul.f32 %v110, 0.5
    %v115 = vmul.f32 %v111, 0.5
    %v116 = vmul.f32 %v112, 0.5
    %v117 = vtanh.pop %v113
    %v118 = vtanh.pop %v114
    %v119 = vtanh.pop %v115
    %v120 = vtanh.pop %v116
    %v121 = vmul.f32 %v117, 0.5
    %v122 = vmul.f32 %v118, 0.5
    %v123 = vmul.f32 %v119, 0.5
    %v124 = vmul.f32 %v120, 0.5
    %v125 = vadd.f32 %v121, 0.5
    %v126 = vadd.f32 %v122, 0.5
    %v127 = vadd.f32 %v123, 0.5
    %v128 = vadd.f32 %v124, 0.5
    %v129 = vld [vmem:[#allocation7] sm:$0xff]
    %v130 = vld [vmem:[#allocation7 + $0x8] sm:$0xff]
    %v131 = vld [vmem:[#allocation7 + $0x10] sm:$0xff]
    %v132 = vld [vmem:[#allocation7 + $0x18] sm:$0xff]
    %v133 = vld [vmem:[#allocation8] sm:$0xff]
    %v134 = vld [vmem:[#allocation8 + $0x8] sm:$0xff]
    %v135 = vld [vmem:[#allocation8 + $0x10] sm:$0xff]
    %v136 = vld [vmem:[#allocation8 + $0x18] sm:$0xff]
    %v137 = vmul.f32 %v125, %v133
    %v138 = vmul.f32 %v126, %v134
    %v139 = vmul.f32 %v127, %v135
    %v140 = vmul.f32 %v128, %v136
    %v141 = vmul.f32 %v129, %v133
    %v142 = vmul.f32 %v130, %v134
    %v143 = vmul.f32 %v131, %v135
    %v144 = vmul.f32 %v132, %v136
    %v145 = vmul.f32 %v137, %v129
    %v146 = vmul.f32 %v138, %v130
    %v147 = vmul.f32 %v139, %v131
    %v148 = vmul.f32 %v140, %v132
    %v149 = vadd.f32 %v145, 0.0
    %v150 = vadd.f32 %v146, 0.0
    %v151 = vadd.f32 %v147, 0.0
    %v152 = vadd.f32 %v148, 0.0
    %153 = vst [vmem:[#allocation10] sm:$0xff] %v149
    %154 = vst [vmem:[#allocation10 + $0x8] sm:$0xff] %v150
    %155 = vst [vmem:[#allocation10 + $0x10] sm:$0xff] %v151
    %156 = vst [vmem:[#allocation10 + $0x18] sm:$0xff] %v152
    %v157 = vadd.f32 %v137, 0.0
    %v158 = vadd.f32 %v138, 0.0
    %v159 = vadd.f32 %v139, 0.0
    %v160 = vadd.f32 %v140, 0.0
    %s161 = scalar_lea.vmem [#allocation10], 32
    %162 = vst [vmem:[%s161] sm:$0xff] %v157
    %163 = vst [vmem:[%s161 + $0x8] sm:$0xff] %v158
    %164 = vst [vmem:[%s161 + $0x10] sm:$0xff] %v159
    %165 = vst [vmem:[%s161 + $0x18] sm:$0xff] %v160
    %v166 = vadd.f32 %v141, 0.0
    %v167 = vadd.f32 %v142, 0.0
    %v168 = vadd.f32 %v143, 0.0
    %v169 = vadd.f32 %v144, 0.0
    %s170 = scalar_lea.vmem [#allocation10], 64
    %171 = vst [vmem:[%s170] sm:$0xff] %v166
    %172 = vst [vmem:[%s170 + $0x8] sm:$0xff] %v167
    %173 = vst [vmem:[%s170 + $0x10] sm:$0xff] %v168
    %174 = vst [vmem:[%s170 + $0x18] sm:$0xff] %v169
    // Predicated region
    $region34: #{tpu_custom_call.1} parent=1 // pred_check
      _
    $region35: #{tpu_custom_call.1} parent=1 // pred_check_branch
      %176 = sbr.rel (0) target = $region37
    $region36: #{tpu_custom_call.1} parent=1 // pred_region
      %s178 = ssub.s32 1536, 1536
      %179 = vsyncadd [#allocation4], %s178
      %s180 = sshll.u32 [#allocation10], 4
      %s181 = int_to_ptr.vmem [resolvable:$true] %s180
      %186 = dma.vmem_to_hbm [thread:$0]  %s181, 1536, %s4, [#allocation4], 512, 512, 32
    $region37: #{tpu_custom_call.1} parent=1 // pred_fallthru
      _
    // Predicated region
    $region38: #{tpu_custom_call.1} parent=1 // pred_check
      _
    $region39: #{tpu_custom_call.1} parent=1 // pred_check_branch
      %188 = sbr.rel (0) target = $region41
    $region40: #{tpu_custom_call.1} parent=1 // pred_region
      %189 = dma.done [#allocation4], 1536
    $region41: #{tpu_custom_call.1} parent=1 // pred_fallthru
      _
    %190 = vsyncpa [#allocation3], 1
    %191 = vsyncpa [#allocation6], 1
    %192 = vsyncpa [#allocation9], 1
    %193 = vsyncpa [#allocation4], 1

</llo_original>
